<compile_context>
chip_gen: v6e
topology: v6e:2x2x1
jax: 0.10.0
libtpu: 0.0.40
codegen_flags: <defaults>
</compile_context>

<pallas_src>
import math
from functools import partial

import jax
import jax.numpy as jnp
from jax import lax
from jax.experimental import pallas as pl
from jax.experimental.pallas import tpu as pltpu


def _gelu(x):
    # tanh approximation of GELU (EUP-friendly); the pure-JAX reference uses the same.
    # TODO(synk): switch to exact erf-based GELU if bit-parity with HF "gelu" is required.
    c = 0.7978845608028654  # sqrt(2/pi)
    return 0.5 * x * (1.0 + jnp.tanh(c * (x + 0.044715 * x * x * x)))


def _layer_norm(x, gamma, beta, eps):
    mean = jnp.mean(x, axis=-1, keepdims=True)
    var = jnp.mean(jnp.square(x - mean), axis=-1, keepdims=True)
    return (x - mean) * lax.rsqrt(var + eps) * gamma + beta


# ----------------------------------------------------------------------------
# Kernel 1: fused QKV projection (one (rows,E)x(E,3E) MXU matmul per step).
# ----------------------------------------------------------------------------
def _qkv_kernel(hs_ref, wqkv_ref, bqkv_ref, q_ref, k_ref, v_ref, *, hidden_size):
    E = hidden_size
    hs = hs_ref[0].astype(wqkv_ref.dtype)                       # (rows, E) -> bf16
    qkv = jnp.dot(hs, wqkv_ref[...],
                  preferred_element_type=jnp.float32) + bqkv_ref[...]
    # Lane-dense (rows, E) slab stores; 1/sqrt(D) is pre-folded into the Q columns.
    q_ref[0] = qkv[:, :E].astype(q_ref.dtype)
    k_ref[0] = qkv[:, E:2 * E].astype(k_ref.dtype)
    v_ref[0] = qkv[:, 2 * E:].astype(v_ref.dtype)


# ----------------------------------------------------------------------------
# Kernel 2: attention core + BertSelfOutput, one (batch, query-tile) per step.
# Heads are a batch dim of the dot_generals (no unrolled per-head loop).
# ----------------------------------------------------------------------------
def _attn_core_kernel(q_ref, k_ref, v_ref, mask_ref, res_ref,
                      wo_ref, bo_ref, g_ref, b_ref,
                      out_ref, *maybe_probs, eps):
    probs_ref = maybe_probs[0] if maybe_probs else None

    q = q_ref[0]                                   # (H, tq, D), already scaled by 1/sqrt(D)
    k = k_ref[0].astype(q.dtype)                   # (H, T,  D)
    v = v_ref[0].astype(q.dtype)                   # (H, T,  D)

    # scores[h, t, s] = sum_d q[h, t, d] * k[h, s, d]      -> (H, tq, T)
    scores = lax.dot_general(q, k, (((2,), (2,)), ((0,), (0,))),
                             preferred_element_type=jnp.float32)
    scores = scores + mask_ref[...].reshape(1, 1, -1)        # additive key mask

    scores = scores - jnp.max(scores, axis=-1, keepdims=True)
    p = jnp.exp(scores)
    # approx reciprocal on the EUP; probs are not bit-identical to torch softmax.
    p = p * pl.reciprocal(jnp.sum(p, axis=-1, keepdims=True), approx=True)

    if probs_ref is not None:
        probs_ref[0] = p.astype(probs_ref.dtype)

    # context[h, t, d] = sum_s p[h, t, s] * v[h, s, d]      -> (H, tq, D)
    ctx = lax.dot_general(p.astype(v.dtype), v, (((2,), (1,)), ((0,), (0,))),
                          preferred_element_type=jnp.float32)

    # BertSelfOutput dense folded per head: out = sum_h ctx_h @ Wo^T[h*D:(h+1)*D, :]
    proj = lax.dot_general(ctx.astype(wo_ref.dtype), wo_ref[...],
                           (((2,), (1,)), ((0,), (0,))),
                           preferred_element_type=jnp.float32)   # (H, tq, E)
    proj = jnp.sum(proj, axis=0) + bo_ref[...]                   # (tq, E)

    y = proj + res_ref[0].astype(jnp.float32)                    # residual
    out_ref[0] = _layer_norm(y, g_ref[...], b_ref[...], eps).astype(out_ref.dtype)


# ----------------------------------------------------------------------------
# Kernel 3: BertIntermediate + BertOutput with I tiled on a reduction grid axis.
# ----------------------------------------------------------------------------
def _ffn_kernel(x_ref, wi_ref, bi_ref, wo_ref, bo_ref, g_ref, b_ref,
                out_ref, acc_ref, *, eps):
    i = pl.program_id(2)

    @pl.when(i == 0)
    def _():
        acc_ref[...] = jnp.zeros_like(acc_ref)

    x = x_ref[0]                                                 # (rows, E)
    h = jnp.dot(x.astype(wi_ref.dtype), wi_ref[...],
                preferred_element_type=jnp.float32) + bi_ref[...]
    h = _gelu(h)                                                 # (rows, ti)
    acc_ref[...] += jnp.dot(h.astype(wo_ref.dtype), wo_ref[...],
                            preferred_element_type=jnp.float32)  # (rows, E)

    @pl.when(i == pl.num_programs(2) - 1)
    def _():
        y = acc_ref[...] + bo_ref[...] + x.astype(jnp.float32)   # bias + residual
        out_ref[0] = _layer_norm(y, g_ref[...], b_ref[...], eps).astype(out_ref.dtype)


def _pick_tile(dim, target, align):
    """Largest divisor of `dim` that is <= target and a multiple of `align`
    (falls back to the full dim, which Pallas always accepts)."""
    if dim <= target:
        return dim
    cand = (target // align) * align
    while cand >= align:
        if dim % cand == 0:
            return cand
        cand -= align
    return dim


def bert_layer(hidden_states, attention_mask, params, history_states=None,
               output_attentions=True, compute_dtype=jnp.bfloat16,
               attn_probs_dtype=None, vmem_limit_bytes=64 * 1024 * 1024):
    """Pallas-backed UNILM BertLayer forward (non-cached path).

    compute_dtype: dtype of MXU matmul operands (bf16 recommended; f32 for parity).
    attn_probs_dtype: dtype of the returned attention probs (None -> hidden dtype;
                      bf16 halves the (N,H,T,T) HBM writeback).
    vmem_limit_bytes: raise to ~100 MiB on v5e/v6e; keep <= ~48 MiB on v7x.
    """
    N, T, E = hidden_states.shape
    H = params["num_attention_heads"]
    D = E // H
    eps = float(params.get("layer_norm_eps", 1e-12))
    dtype = hidden_states.dtype
    probs_dtype = attn_probs_dtype if attn_probs_dtype is not None else dtype

    # ---- host-side weight prep (layout + dtype plumbing, done once) ----------
    inv_sqrt_d = 1.0 / math.sqrt(D)
    # nn.Linear computes y = x @ W^T + b -> transpose once; fold 1/sqrt(D) into Q.
    wqkv = jnp.concatenate([params["wq"].T * inv_sqrt_d,
                            params["wk"].T,
                            params["wv"].T], axis=1).astype(compute_dtype)   # (E, 3E)
    bqkv = jnp.concatenate([params["bq"] * inv_sqrt_d,
                            params["bk"],
                            params["bv"]]).reshape(1, 3 * E).astype(jnp.float32)
    # Self-output projection head-major so the kernel never transposes the context.
    wo_attn = params["wo_attn"].T.reshape(H, D, E).astype(compute_dtype)      # (H, D, E)
    bo_attn = params["bo_attn"].reshape(1, E).astype(jnp.float32)
    ln1_g = params["ln1_gamma"].reshape(1, E).astype(jnp.float32)
    ln1_b = params["ln1_beta"].reshape(1, E).astype(jnp.float32)
    wi = params["wi"].T.astype(compute_dtype)                                 # (E, I)
    bi = params["bi"].reshape(1, -1).astype(jnp.float32)
    wo_ffn = params["wo_ffn"].T.astype(compute_dtype)                         # (I, E)
    bo_ffn = params["bo_ffn"].reshape(1, E).astype(jnp.float32)
    ln2_g = params["ln2_gamma"].reshape(1, E).astype(jnp.float32)
    ln2_b = params["ln2_beta"].reshape(1, E).astype(jnp.float32)
    I_dim = wi.shape[1]
    mask = attention_mask.astype(jnp.float32)

    tr = _pick_tile(T, 256, 8)         # row tile (QKV projection / FFN)
    tq = _pick_tile(T, 128, 8)         # query tile (attention core)
    ti = _pick_tile(I_dim, 512, 128)   # FFN intermediate reduction tile

    def cparams(sem):
        return pltpu.CompilerParams(dimension_semantics=sem,
                                    vmem_limit_bytes=vmem_limit_bytes)

    def const(shape):
        # Constant (grid-invariant) weight block.
        # TODO(synk): single-buffer via pipeline_mode=pl.Buffered(1) once verified.
        nranks = len(shape)
        return pl.BlockSpec(shape, lambda *_: (0,) * nranks)

    # ---- 1) fused QKV projection ---------------------------------------------
    q_slab, k_slab, v_slab = pl.pallas_call(
        partial(_qkv_kernel, hidden_size=E),
        out_shape=(jax.ShapeDtypeStruct((N, T, E), compute_dtype),   # scaled Q (internal)
                   jax.ShapeDtypeStruct((N, T, E), dtype),           # K (history_states)
                   jax.ShapeDtypeStruct((N, T, E), dtype)),          # V (history_states)
        grid=(N, T // tr),
        in_specs=[pl.BlockSpec((1, tr, E), lambda b, t: (b, t, 0)),
                  const((E, 3 * E)),
                  const((1, 3 * E))],
        out_specs=(pl.BlockSpec((1, tr, E), lambda b, t: (b, t, 0)),
                   pl.BlockSpec((1, tr, E), lambda b, t: (b, t, 0)),
                   pl.BlockSpec((1, tr, E), lambda b, t: (b, t, 0))),
        compiler_params=cparams(("parallel", "parallel")),
    )(hidden_states, wqkv, bqkv)

    # Head split done once in XLA (cheap layout plumbing; identical to torch's
    # transpose_for_scores and needed anyway for the history_states cache).
    def to_heads(x):
        return x.reshape(N, T, H, D).transpose(0, 2, 1, 3)          # (N, H, T, D)

    q_h, k_h, v_h = to_heads(q_slab), to_heads(k_slab), to_heads(v_slab)

    if history_states is not None and len(history_states) == 0:
        history_states.update({"prev_enc_key_layer": k_h,
                               "prev_enc_value_layer": v_h})

    # ---- 2) attention core + BertSelfOutput -----------------------------------
    attn_out_shapes = [jax.ShapeDtypeStruct((N, T, E), dtype)]
    attn_out_specs = [pl.BlockSpec((1, tq, E), lambda b, t: (b, t, 0))]
    if output_attentions:
        attn_out_shapes.append(jax.ShapeDtypeStruct((N, H, T, T), probs_dtype))
        attn_out_specs.append(pl.BlockSpec((1, H, tq, T), lambda b, t: (b, 0, t, 0)))

    attn_res = pl.pallas_call(
        partial(_attn_core_kernel, eps=eps),
        out_shape=tuple(attn_out_shapes),
        grid=(N, T // tq),
        in_specs=[
            pl.BlockSpec((1, H, tq, D), lambda b, t: (b, 0, t, 0)),   # Q tile (scaled)
            pl.BlockSpec((1, H, T, D), lambda b, t: (b, 0, 0, 0)),    # K (full seq)
            pl.BlockSpec((1, H, T, D), lambda b, t: (b, 0, 0, 0)),    # V (full seq)
            pl.BlockSpec((1, 1, 1, T), lambda b, t: (b, 0, 0, 0)),    # additive mask
            pl.BlockSpec((1, tq, E), lambda b, t: (b, t, 0)),         # residual
            const((H, D, E)),                                         # Wo (head-major)
            const((1, E)),                                            # bo
            const((1, E)), const((1, E)),                             # LN1 gamma/beta
        ],
        out_specs=tuple(attn_out_specs),
        compiler_params=cparams(("parallel", "parallel")),
    )(q_h, k_h, v_h, mask, hidden_states, wo_attn, bo_attn, ln1_g, ln1_b)

    if output_attentions:
        attention_output, attention_probs = attn_res
    else:
        (attention_output,) = attn_res
        attention_probs = None

    # ---- 3) BertIntermediate + BertOutput (FFN, I-dim reduction) --------------
    layer_output = pl.pallas_call(
        partial(_ffn_kernel, eps=eps),
        out_shape=jax.ShapeDtypeStruct((N, T, E), dtype),
        grid=(N, T // tr, I_dim // ti),
        in_specs=[
            pl.BlockSpec((1, tr, E), lambda b, t, i: (b, t, 0)),
            pl.BlockSpec((E, ti), lambda b, t, i: (0, i)),
            pl.BlockSpec((1, ti), lambda b, t, i: (0, i)),
            pl.BlockSpec((ti, E), lambda b, t, i: (i, 0)),
            const((1, E)),                                            # bo
            const((1, E)), const((1, E)),                             # LN2 gamma/beta
        ],
        out_specs=pl.BlockSpec((1, tr, E), lambda b, t, i: (b, t, 0)),
        scratch_shapes=[pltpu.VMEM((tr, E), jnp.float32)],
        compiler_params=cparams(("parallel", "parallel", "arbitrary")),
    )(attention_output, wi, bi, wo_ffn, bo_ffn, ln2_g, ln2_b)

    return (layer_output, attention_probs) if output_attentions else (layer_output,)


def _reference(hidden_states, attention_mask, params):
    """Pure-JAX f32 reference for numerical checking (same GELU approximation)."""
    N, T, E = hidden_states.shape
    H = params["num_attention_heads"]
    D = E // H
    eps = float(params.get("layer_norm_eps", 1e-12))

    q = hidden_states @ params["wq"].T + params["bq"]
    k = hidden_states @ params["wk"].T + params["bk"]
    v = hidden_states @ params["wv"].T + params["bv"]

    def split(x):
        return x.reshape(N, T, H, D).transpose(0, 2, 1, 3)       # (N, H, T, D)

    qh, kh, vh = split(q), split(k), split(v)
    scores = jnp.einsum("bhtd,bhsd->bhts", qh, kh) / math.sqrt(D) + attention_mask
    probs = jax.nn.softmax(scores, axis=-1)
    ctx = jnp.einsum("bhts,bhsd->bhtd", probs, vh).transpose(0, 2, 1, 3).reshape(N, T, E)

    attn_out = _layer_norm(ctx @ params["wo_attn"].T + params["bo_attn"] + hidden_states,
                           params["ln1_gamma"], params["ln1_beta"], eps)
    inter = _gelu(attn_out @ params["wi"].T + params["bi"])
    layer_out = _layer_norm(inter @ params["wo_ffn"].T + params["bo_ffn"] + attn_out,
                            params["ln2_gamma"], params["ln2_beta"], eps)
    return layer_out, probs, attn_out


if __name__ == "__main__":
    # Small config: hidden_size=32, num_attention_heads=4, intermediate=128, seq=8, batch=2.
    N, T, E, H = 2, 8, 32, 4
    I_dim = 4 * E

    key = jax.random.PRNGKey(0)
    keys = jax.random.split(key, 16)

    hidden_states = jax.random.normal(keys[0], (N, T, E), dtype=jnp.float32)
    mask_bits = (jax.random.uniform(keys[1], (N, 1, 1, T)) > 0.2).astype(jnp.float32)
    attention_mask = (1.0 - mask_bits) * -10000.0            # additive mask

    def w(k, shape, s=0.05):
        return jax.random.normal(k, shape, dtype=jnp.float32) * s

    params = {
        "num_attention_heads": H,
        "layer_norm_eps": 1e-12,
        "wq": w(keys[2], (E, E)), "bq": w(keys[3], (E,)),
        "wk": w(keys[4], (E, E)), "bk": w(keys[5], (E,)),
        "wv": w(keys[6], (E, E)), "bv": w(keys[7], (E,)),
        "wo_attn": w(keys[8], (E, E)), "bo_attn": w(keys[9], (E,)),
        "ln1_gamma": 1.0 + w(keys[10], (E,)), "ln1_beta": w(keys[11], (E,)),
        "wi": w(keys[12], (I_dim, E)), "bi": w(keys[13], (I_dim,)),
        "wo_ffn": w(keys[14], (E, I_dim)), "bo_ffn": w(keys[15], (E,)),
        "ln2_gamma": 1.0 + 0.5 * w(keys[10], (E,)), "ln2_beta": 0.5 * w(keys[11], (E,)),
    }

    ref_out, ref_probs, _ = _reference(hidden_states, attention_mask, params)

    # Default bf16-MXU path (what production would run).
    history_states = {}
    layer_out, probs = bert_layer(hidden_states, attention_mask, params,
                                  history_states=history_states,
                                  output_attentions=True)
    jax.block_until_ready(layer_out)
    jax.block_until_ready(probs)
    assert jnp.allclose(probs, ref_probs, atol=3e-2, rtol=3e-2), \
        float(jnp.max(jnp.abs(probs - ref_probs)))
    assert jnp.allclose(layer_out, ref_out, atol=3e-2, rtol=3e-2), \
        float(jnp.max(jnp.abs(layer_out - ref_out)))
    assert "prev_enc_key_layer" in history_states
    assert history_states["prev_enc_key_layer"].shape == (N, H, T, E // H)

    # f32-operand path for tighter numerical parity with the reference.
    layer_out32, probs32 = bert_layer(hidden_states, attention_mask, params,
                                      output_attentions=True,
                                      compute_dtype=jnp.float32)
    jax.block_until_ready(layer_out32)
    assert jnp.allclose(probs32, ref_probs, atol=1e-2, rtol=1e-2), \
        float(jnp.max(jnp.abs(probs32 - ref_probs)))
    assert jnp.allclose(layer_out32, ref_out, atol=1e-2, rtol=1e-2), \
        float(jnp.max(jnp.abs(layer_out32 - ref_out)))

    # probs-free variant (skips the (N,H,T,T) HBM writeback entirely).
    (layer_out2,) = bert_layer(hidden_states, attention_mask, params,
                               output_attentions=False)
    jax.block_until_ready(layer_out2)
    assert jnp.allclose(layer_out2, ref_out, atol=3e-2, rtol=3e-2)

    print("KERNEL_OK")
</pallas_src>

<mosaic_0001>
module attributes {stable_mosaic.version = 11 : i64} {
  func.func @_qkv_kernel(%arg0: i32, %arg1: i32, %arg2: memref<1x8x32xf32, #tpu.memory_space<vmem>>, %arg3: memref<32x96xbf16, #tpu.memory_space<vmem>>, %arg4: memref<1x96xf32, #tpu.memory_space<vmem>>, %arg5: memref<1x8x32xbf16, #tpu.memory_space<vmem>>, %arg6: memref<1x8x32xf32, #tpu.memory_space<vmem>>, %arg7: memref<1x8x32xf32, #tpu.memory_space<vmem>>) attributes {dimension_semantics = [#tpu.dimension_semantics<parallel>, #tpu.dimension_semantics<parallel>], iteration_bounds = array<i64: 2, 1>, scalar_prefetch = 0 : i64, scratch_operands = 0 : i64, tpu.core_type = #tpu.core_type<tc>, window_params = [{transform_indices = @transform_0, window_bounds = array<i64: 1, 8, 32>}, {pipeline_mode = #tpu.pipeline_mode<synchronous>, transform_indices = @transform_1, window_bounds = array<i64: 32, 96>}, {pipeline_mode = #tpu.pipeline_mode<synchronous>, transform_indices = @transform_2, window_bounds = array<i64: 1, 96>}, {transform_indices = @transform_3, window_bounds = array<i64: 1, 8, 32>}, {transform_indices = @transform_4, window_bounds = array<i64: 1, 8, 32>}, {transform_indices = @transform_5, window_bounds = array<i64: 1, 8, 32>}]} {
    %c0 = arith.constant 0 : index
    %c0_0 = arith.constant 0 : index
    %c0_1 = arith.constant 0 : index
    %0 = vector.load %arg2[%c0, %c0_0, %c0_1] : memref<1x8x32xf32, #tpu.memory_space<vmem>>, vector<1x8x32xf32>
    %1 = vector.shape_cast %0 : vector<1x8x32xf32> to vector<8x32xf32>
    %2 = arith.truncf %1 : vector<8x32xf32> to vector<8x32xbf16>
    %c0_2 = arith.constant 0 : index
    %c0_3 = arith.constant 0 : index
    %3 = vector.load %arg3[%c0_2, %c0_3] : memref<32x96xbf16, #tpu.memory_space<vmem>>, vector<32x96xbf16>
    %cst = arith.constant dense<0.000000e+00> : vector<8x96xf32>
    %4 = tpu.matmul %2, %3, %cst {dimension_numbers = #tpu.dot_dimension_numbers<[1], [0], [0], [1], [0, 0, 1, 1], [], []>} : vector<8x32xbf16>, vector<32x96xbf16>, vector<8x96xf32> -> vector<8x96xf32>
    %c0_4 = arith.constant 0 : index
    %c0_5 = arith.constant 0 : index
    %5 = vector.load %arg4[%c0_4, %c0_5] : memref<1x96xf32, #tpu.memory_space<vmem>>, vector<1x96xf32>
    %6 = vector.broadcast %5 : vector<1x96xf32> to vector<8x96xf32>
    %7 = arith.addf %4, %6 : vector<8x96xf32>
    %8 = vector.extract_strided_slice %7 {offsets = [0, 0], sizes = [8, 32], strides = [1, 1]} : vector<8x96xf32> to vector<8x32xf32>
    %9 = arith.truncf %8 : vector<8x32xf32> to vector<8x32xbf16>
    %c0_6 = arith.constant 0 : index
    %c0_7 = arith.constant 0 : index
    %c0_8 = arith.constant 0 : index
    %10 = vector.load %arg5[%c0_6, %c0_7, %c0_8] : memref<1x8x32xbf16, #tpu.memory_space<vmem>>, vector<1x8x32xbf16>
    %11 = vector.shape_cast %10 : vector<1x8x32xbf16> to vector<8x32xbf16>
    %12 = vector.shape_cast %9 : vector<8x32xbf16> to vector<1x8x32xbf16>
    tpu.vector_store %arg5[%c0_6, %c0_7, %c0_8], %12 {strides = array<i32>} : memref<1x8x32xbf16, #tpu.memory_space<vmem>>, vector<1x8x32xbf16>,
    %13 = vector.extract_strided_slice %7 {offsets = [0, 32], sizes = [8, 32], strides = [1, 1]} : vector<8x96xf32> to vector<8x32xf32>
    %c0_9 = arith.constant 0 : index
    %c0_10 = arith.constant 0 : index
    %c0_11 = arith.constant 0 : index
    %14 = vector.load %arg6[%c0_9, %c0_10, %c0_11] : memref<1x8x32xf32, #tpu.memory_space<vmem>>, vector<1x8x32xf32>
    %15 = vector.shape_cast %14 : vector<1x8x32xf32> to vector<8x32xf32>
    %16 = vector.shape_cast %13 : vector<8x32xf32> to vector<1x8x32xf32>
    tpu.vector_store %arg6[%c0_9, %c0_10, %c0_11], %16 {strides = array<i32>} : memref<1x8x32xf32, #tpu.memory_space<vmem>>, vector<1x8x32xf32>,
    %17 = vector.extract_strided_slice %7 {offsets = [0, 64], sizes = [8, 32], strides = [1, 1]} : vector<8x96xf32> to vector<8x32xf32>
    %c0_12 = arith.constant 0 : index
    %c0_13 = arith.constant 0 : index
    %c0_14 = arith.constant 0 : index
    %18 = vector.load %arg7[%c0_12, %c0_13, %c0_14] : memref<1x8x32xf32, #tpu.memory_space<vmem>>, vector<1x8x32xf32>
    %19 = vector.shape_cast %18 : vector<1x8x32xf32> to vector<8x32xf32>
    %20 = vector.shape_cast %17 : vector<8x32xf32> to vector<1x8x32xf32>
    tpu.vector_store %arg7[%c0_12, %c0_13, %c0_14], %20 {strides = array<i32>} : memref<1x8x32xf32, #tpu.memory_space<vmem>>, vector<1x8x32xf32>,
    return
  }
  func.func @transform_0(%arg0: i32, %arg1: i32) -> (i32, i32, i32) {
    %c0_i32 = arith.constant 0 : i32
    %c0_i32_0 = arith.constant 0 : i32
    return %arg0, %arg1, %c0_i32 : i32, i32, i32
  }
  func.func @transform_1(%arg0: i32, %arg1: i32) -> (i32, i32) {
    %c0_i32 = arith.constant 0 : i32
    %c0_i32_0 = arith.constant 0 : i32
    %c0_i32_1 = arith.constant 0 : i32
    return %c0_i32, %c0_i32_0 : i32, i32
  }
  func.func @transform_2(%arg0: i32, %arg1: i32) -> (i32, i32) {
    %c0_i32 = arith.constant 0 : i32
    %c0_i32_0 = arith.constant 0 : i32
    %c0_i32_1 = arith.constant 0 : i32
    return %c0_i32, %c0_i32_0 : i32, i32
  }
  func.func @transform_3(%arg0: i32, %arg1: i32) -> (i32, i32, i32) {
    %c0_i32 = arith.constant 0 : i32
    %c0_i32_0 = arith.constant 0 : i32
    return %arg0, %arg1, %c0_i32 : i32, i32, i32
  }
  func.func @transform_4(%arg0: i32, %arg1: i32) -> (i32, i32, i32) {
    %c0_i32 = arith.constant 0 : i32
    %c0_i32_0 = arith.constant 0 : i32
    return %arg0, %arg1, %c0_i32 : i32, i32, i32
  }
  func.func @transform_5(%arg0: i32, %arg1: i32) -> (i32, i32, i32) {
    %c0_i32 = arith.constant 0 : i32
    %c0_i32_0 = arith.constant 0 : i32
    return %arg0, %arg1, %c0_i32 : i32, i32, i32
  }
}

</mosaic_0001>

<llo_original>
// kernel: tpu_custom_call.1
$region0: #{tpu_custom_call.1}
  #allocation0 [shape = 'u32[]', space=smem, size = 0x4, offset = 0x4, fixed_abs, tag = 'smem constant byte address 0x4 - core index']
  #allocation1 [shape = 'u32[144,128]{1,0:T(1,128)}', space=vmem, size = 0x12000, scoped, tag = 'internal scratch']
  %s0 = inlined_call_operand.hbm [shape: f32[2,8,32], index: 0, kind: input, shape index: {}]
  %s1 = inlined_call_operand.hbm [shape: bf16[32,96], index: 1, kind: input, shape index: {}]
  %s2 = inlined_call_operand.vmem [shape: f32[1,96], index: 2, kind: input, shape index: {}]
  %s3 = inlined_call_operand.hbm [shape: bf16[2,8,32], index: 3, kind: output, shape index: {0}]
  %s4 = inlined_call_operand.hbm [shape: f32[2,8,32], index: 4, kind: output, shape index: {1}]
  %s5 = inlined_call_operand.hbm [shape: f32[2,8,32], index: 5, kind: output, shape index: {2}]
  %6 = xla_tuple %s3, %s4, %s5
  %s7 = sld [smem:[#allocation0]]
  $region69: #{tpu_custom_call.1} parent=0
    _
  %s9 = ssub.s32 1, %s7
  %s10 = scalar_select 0, %s9, %s7
  $region1: #{tpu_custom_call.1} parent=0
    #allocation2 [shape = 'u8[8192]{0}', space=vmem, size = 0x2000, scoped, tag = 'input window, operand 0']
    #allocation3 [shape = 's32[2]{0}', space=sflag, size = 0x8, scoped, tag = 'scoped memory for tpu_custom_call.1']
    #allocation4 [shape = 's32[2]{0}', space=sflag, size = 0x8, scoped, tag = 'scoped memory for tpu_custom_call.1']
    #allocation5 [shape = 'u8[8192]{0}', space=vmem, size = 0x2000, scoped, tag = 'input window, operand 1, single buffered']
    #allocation6 [shape = 's32[1]{0}', space=sflag, size = 0x4, scoped, tag = 'scoped memory for tpu_custom_call.1']
    #allocation7 [shape = 'u8[4096]{0}', space=vmem, size = 0x1000, scoped, tag = 'output window, operand 0']
    #allocation8 [shape = 'u8[8192]{0}', space=vmem, size = 0x2000, scoped, tag = 'output window, operand 1']
    #allocation9 [shape = 's32[2]{0}', space=sflag, size = 0x8, scoped, tag = 'scoped memory for tpu_custom_call.1']
    #allocation10 [shape = 'u8[8192]{0}', space=vmem, size = 0x2000, scoped, tag = 'output window, operand 2']
    %11 = vsyncpa [#allocation3], 0
    %s12 = scalar_lea.sflag [#allocation3], 1
    %13 = vsyncpa %s12, 0
    %14 = vsyncpa [#allocation6], 0
    %15 = vsyncpa [#allocation4], 0
    %s16 = scalar_lea.sflag [#allocation4], 1
    %17 = vsyncpa %s16, 0
    %18 = vsyncpa [#allocation9], 0
    %s19 = scalar_lea.sflag [#allocation9], 1
    %20 = vsyncpa %s19, 0
    loop: start=0, step=1, limit=4
    $region2: #{tpu_custom_call.1} parent=1 // loop_pre_header
      _
    $region3: #{tpu_custom_call.1} parent=1 // loop_header
      %s22 = sphi 0, %s26
      %p23 = scmp.ge.s32.totalorder %s22, 4
      %s29 = sphi 0, %s41
      %s30 = sphi 0, %s37
      %s31 = sphi 0, %s29
      %s32 = sphi 0, %s30
      %s33 = sphi 0, %s31
      %s34 = sphi 0, %s32
      %s46 = sphi 0, %s48
      %s49 = sphi 0, %s46
      %s50 = sphi 0, %s49
      %s66 = sphi 0, %s50
      %s70 = sphi 0, %s70
      %s72 = sphi 0, %s70
      %s73 = sphi 0, %s72
      %s87 = sphi 0, %s73
      %s91 = sphi 0, %s91
      %s93 = sphi 0, %s91
      %s94 = sphi 0, %s93
      %s108 = sphi 0, %s94
      %s116 = sphi 0, %s118
      %s119 = sphi 0, %s116
      %s120 = sphi 0, %s119
      %s136 = sphi 0, %s120
      %s144 = sphi 0, %s146
      %s147 = sphi 0, %s144
      %s148 = sphi 0, %s147
      %s164 = sphi 0, %s148
      %s172 = sphi 0, %s174
      %s175 = sphi 0, %s172
      %s176 = sphi 0, %s175
      %s192 = sphi 0, %s176
    $region4: #{tpu_custom_call.1} parent=1 // loop_header_branch
      %25 = sbr.rel (%p23) target = $region8
    $region5: #{tpu_custom_call.1} parent=1 // loop_body
      %s27 = ssub.s32 %s22, 1
      %s28 = ssub.s32 %s22, 2
      %s35 = sadd.s32 1, %s30
      %p36 = scmp.ge.s32.totalorder %s35, 1
      %s37 = scalar_select %p36, 0, %s35
      %s38 = sadd.s32 1, %s29
      %s39 = scalar_select %p36, %s38, %s29
      %p40 = scmp.ge.s32.totalorder %s39, 2
      %s41 = scalar_select %p40, 0, %s39
      %s42 = ssub.s32 %s29, %s41
      %s43 = ssub.s32 %s30, %s37
      %s44 = sor.u32 %s42, %s43
      %p45 = scmp.eq.s32.totalorder %s44, 0
      %s47 = sadd.s32 %s46, 1
      %s48 = scalar_select %p45, %s46, %s47
      %p51 = pneg %p45
      %p52 = scmp.eq.s32.totalorder %s22, 1
      %p53 = por %p51, %p52
      %p54 = scmp.ne.s32.totalorder %s46, %s49
      %p55 = scmp.eq.s32.totalorder %s22, 0
      %p56 = por %p54, %p55
      %p57 = scmp.ne.s32.totalorder %s46, %s49
      %p58 = scmp.eq.s32.totalorder %s27, 1
      %p59 = por %p57, %p58
      %p60 = scmp.ne.s32.totalorder %s49, %s50
      %p61 = scmp.eq.s32.totalorder %s27, 0
      %p62 = por %p60, %p61
      %p63 = scmp.ne.s32.totalorder %s49, %s50
      %p64 = scmp.eq.s32.totalorder %s28, 1
      %p65 = por %p63, %p64
      %p67 = scmp.ne.s32.totalorder %s50, %s66
      %p68 = scmp.eq.s32.totalorder %s28, 0
      %p69 = por %p67, %p68
      %s71 = sadd.s32 %s70, 1
      %p74 = scmp.eq.s32.totalorder %s22, 1
      %p75 = scmp.ne.s32.totalorder %s70, %s72
      %p76 = scmp.eq.s32.totalorder %s22, 0
      %p77 = por %p75, %p76
      %p78 = scmp.ne.s32.totalorder %s70, %s72
      %p79 = scmp.eq.s32.totalorder %s27, 1
      %p80 = por %p78, %p79
      %p81 = scmp.ne.s32.totalorder %s72, %s73
      %p82 = scmp.eq.s32.totalorder %s27, 0
      %p83 = por %p81, %p82
      %p84 = scmp.ne.s32.totalorder %s72, %s73
      %p85 = scmp.eq.s32.totalorder %s28, 1
      %p86 = por %p84, %p85
      %p88 = scmp.ne.s32.totalorder %s73, %s87
      %p89 = scmp.eq.s32.totalorder %s28, 0
      %p90 = por %p88, %p89
      %s92 = sadd.s32 %s91, 1
      %p95 = scmp.eq.s32.totalorder %s22, 1
      %p96 = scmp.ne.s32.totalorder %s91, %s93
      %p97 = scmp.eq.s32.totalorder %s22, 0
      %p98 = por %p96, %p97
      %p99 = scmp.ne.s32.totalorder %s91, %s93
      %p100 = scmp.eq.s32.totalorder %s27, 1
      %p101 = por %p99, %p100
      %p102 = scmp.ne.s32.totalorder %s93, %s94
      %p103 = scmp.eq.s32.totalorder %s27, 0
      %p104 = por %p102, %p103
      %p105 = scmp.ne.s32.totalorder %s93, %s94
      %p106 = scmp.eq.s32.totalorder %s28, 1
      %p107 = por %p105, %p106
      %p109 = scmp.ne.s32.totalorder %s94, %s108
      %p110 = scmp.eq.s32.totalorder %s28, 0
      %p111 = por %p109, %p110
      %s112 = ssub.s32 %s29, %s41
      %s113 = ssub.s32 %s30, %s37
      %s114 = sor.u32 %s112, %s113
      %p115 = scmp.eq.s32.totalorder %s114, 0
      %s117 = sadd.s32 %s116, 1
      %s118 = scalar_select %p115, %s116, %s117
      %p121 = pneg %p115
      %p122 = scmp.eq.s32.totalorder %s22, 1
      %p123 = por %p121, %p122
      %p124 = scmp.ne.s32.totalorder %s116, %s119
      %p125 = scmp.eq.s32.totalorder %s22, 0
      %p126 = por %p124, %p125
      %p127 = scmp.ne.s32.totalorder %s116, %s119
      %p128 = scmp.eq.s32.totalorder %s27, 1
      %p129 = por %p127, %p128
      %p130 = scmp.ne.s32.totalorder %s119, %s120
      %p131 = scmp.eq.s32.totalorder %s27, 0
      %p132 = por %p130, %p131
      %p133 = scmp.ne.s32.totalorder %s119, %s120
      %p134 = scmp.eq.s32.totalorder %s28, 1
      %p135 = por %p133, %p134
      %p137 = scmp.ne.s32.totalorder %s120, %s136
      %p138 = scmp.eq.s32.totalorder %s28, 0
      %p139 = por %p137, %p138
      %s140 = ssub.s32 %s29, %s41
      %s141 = ssub.s32 %s30, %s37
      %s142 = sor.u32 %s140, %s141
      %p143 = scmp.eq.s32.totalorder %s142, 0
      %s145 = sadd.s32 %s144, 1
      %s146 = scalar_select %p143, %s144, %s145
      %p149 = pneg %p143
      %p150 = scmp.eq.s32.totalorder %s22, 1
      %p151 = por %p149, %p150
      %p152 = scmp.ne.s32.totalorder %s144, %s147
      %p153 = scmp.eq.s32.totalorder %s22, 0
      %p154 = por %p152, %p153
      %p155 = scmp.ne.s32.totalorder %s144, %s147
      %p156 = scmp.eq.s32.totalorder %s27, 1
      %p157 = por %p155, %p156
      %p158 = scmp.ne.s32.totalorder %s147, %s148
      %p159 = scmp.eq.s32.totalorder %s27, 0
      %p160 = por %p158, %p159
      %p161 = scmp.ne.s32.totalorder %s147, %s148
      %p162 = scmp.eq.s32.totalorder %s28, 1
      %p163 = por %p161, %p162
      %p165 = scmp.ne.s32.totalorder %s148, %s164
      %p166 = scmp.eq.s32.totalorder %s28, 0
      %p167 = por %p165, %p166
      %s168 = ssub.s32 %s29, %s41
      %s169 = ssub.s32 %s30, %s37
      %s170 = sor.u32 %s168, %s169
      %p171 = scmp.eq.s32.totalorder %s170, 0
      %s173 = sadd.s32 %s172, 1
      %s174 = scalar_select %p171, %s172, %s173
      %p177 = pneg %p171
      %p178 = scmp.eq.s32.totalorder %s22, 1
      %p179 = por %p177, %p178
      %p180 = scmp.ne.s32.totalorder %s172, %s175
      %p181 = scmp.eq.s32.totalorder %s22, 0
      %p182 = por %p180, %p181
      %p183 = scmp.ne.s32.totalorder %s172, %s175
      %p184 = scmp.eq.s32.totalorder %s27, 1
      %p185 = por %p183, %p184
      %p186 = scmp.ne.s32.totalorder %s175, %s176
      %p187 = scmp.eq.s32.totalorder %s27, 0
      %p188 = por %p186, %p187
      %p189 = scmp.ne.s32.totalorder %s175, %s176
      %p190 = scmp.eq.s32.totalorder %s28, 1
      %p191 = por %p189, %p190
      %p193 = scmp.ne.s32.totalorder %s176, %s192
      %p194 = scmp.eq.s32.totalorder %s28, 0
      %p195 = por %p193, %p194
      %p196 = scmp.le.s32.totalorder 1, %s22
      %p197 = scmp.lt.s32.totalorder %s22, 3
      %p198 = pnand %p196, %p197
      %p199 = pneg %p198
      // Predicated region
      $region9: #{tpu_custom_call.1} parent=5 // pred_check
        _
      $region10: #{tpu_custom_call.1} parent=5 // pred_check_branch
        %201 = sbr.rel (%p198) target = $region12
      $region11: #{tpu_custom_call.1} parent=5 // pred_region
        %s202 = ssub.s32 %s22, 1
        // Predicated region
        $region13: #{tpu_custom_call.1} parent=11 // pred_check
          %p203 = pneg %p83
        $region14: #{tpu_custom_call.1} parent=11 // pred_check_branch
          %205 = sbr.rel (%p203) target = $region16
        $region15: #{tpu_custom_call.1} parent=11 // pred_region
          %s207 = ssub.s32 256, 256
          %208 = vsyncadd [#allocation6], %s207
          %s209 = sshll.u32 [#allocation5], 4
          %s210 = int_to_ptr.vmem [resolvable:$true] %s209
          %215 = dma.hbm_to_vmem [thread:$0]  %s1, 256, %s210, [#allocation6], 64, 64, 4
        $region16: #{tpu_custom_call.1} parent=11 // pred_fallthru
          _
        // Predicated region
        $region17: #{tpu_custom_call.1} parent=11 // pred_check
          %p216 = pneg %p104
        $region18: #{tpu_custom_call.1} parent=11 // pred_check_branch
          %218 = sbr.rel (%p216) target = $region20
        $region19: #{tpu_custom_call.1} parent=11 // pred_region
          _
        $region20: #{tpu_custom_call.1} parent=11 // pred_fallthru
          _
      $region12: #{tpu_custom_call.1} parent=5 // pred_fallthru
        _
      %p219 = scmp.lt.s32.totalorder %s22, 2
      // Predicated region
      $region21: #{tpu_custom_call.1} parent=5 // pred_check
        %p220 = pneg %p219
      $region22: #{tpu_custom_call.1} parent=5 // pred_check_branch
        %222 = sbr.rel (%p220) target = $region24
      $region23: #{tpu_custom_call.1} parent=5 // pred_region
        // Predicated region
        $region25: #{tpu_custom_call.1} parent=23 // pred_check
          %p223 = pneg %p56
        $region26: #{tpu_custom_call.1} parent=23 // pred_check_branch
          %225 = sbr.rel (%p223) target = $region28
        $region27: #{tpu_custom_call.1} parent=23 // pred_region
          %s226 = sand.u32 %s46, 1
          %s227 = scalar_lea.sflag [#allocation3], %s226
          %s228 = sand.u32 %s46, 1
          %s229 = smul.addr %s228, 8
          %s230 = scalar_lea.vmem [#allocation2], %s229
          %s232 = ssub.s32 128, 128
          %233 = vsyncadd %s227, %s232
          %s234 = sadd.s32 %s30, %s29
          %s235 = smul.addr %s234, 128
          %s236 = scalar_lea.hbm %s0, %s235
          %s238 = sshll.u32 %s230, 4
          %s239 = int_to_ptr.vmem [resolvable:$true] %s238
          %241 = dma.hbm_to_vmem [thread:$0]  %s236, 128, %s239, %s227
        $region28: #{tpu_custom_call.1} parent=23 // pred_fallthru
          _
      $region24: #{tpu_custom_call.1} parent=5 // pred_fallthru
        _
      %p242 = scmp.le.s32.totalorder 1, %s22
      %p243 = scmp.lt.s32.totalorder %s22, 3
      %p244 = pnand %p242, %p243
      %p245 = pneg %p244
      // Predicated region
      $region29: #{tpu_custom_call.1} parent=5 // pred_check
        _
      $region30: #{tpu_custom_call.1} parent=5 // pred_check_branch
        %247 = sbr.rel (%p244) target = $region32
      $region31: #{tpu_custom_call.1} parent=5 // pred_region
        %s248 = ssub.s32 %s22, 1
        %s249 = sand.u32 %s49, 1
        %s250 = scalar_lea.sflag [#allocation3], %s249
        %s251 = sand.u32 %s49, 1
        %s252 = smul.addr %s251, 8
        %s253 = scalar_lea.vmem [#allocation2], %s252
        // Predicated region
        $region33: #{tpu_custom_call.1} parent=31 // pred_check
          %p254 = pneg %p62
        $region34: #{tpu_custom_call.1} parent=31 // pred_check_branch
          %256 = sbr.rel (%p254) target = $region36
        $region35: #{tpu_custom_call.1} parent=31 // pred_region
          %257 = dma.done %s250, 128
        $region36: #{tpu_custom_call.1} parent=31 // pred_fallthru
          _
        // Predicated region
        $region37: #{tpu_custom_call.1} parent=31 // pred_check
          %p258 = pneg %p83
        $region38: #{tpu_custom_call.1} parent=31 // pred_check_branch
          %260 = sbr.rel (%p258) target = $region40
        $region39: #{tpu_custom_call.1} parent=31 // pred_region
          %261 = dma.done [#allocation6], 256
        $region40: #{tpu_custom_call.1} parent=31 // pred_fallthru
          _
        %s262 = sand.u32 %s49, 1
        %s263 = scalar_lea.sflag [#allocation3], %s262
        %s264 = sand.u32 %s49, 1
        %s265 = smul.addr %s264, 8
        %s266 = scalar_lea.vmem [#allocation2], %s265
        %p267 = pneg %p62
        %p268 = pneg %p59
        %p269 = pneg %p83
        %p270 = pneg %p80
        %p271 = pneg %p104
        %p272 = pneg %p101
        %p273 = pneg %p132
        %p274 = pneg %p129
        %s275 = sand.u32 %s119, 1
        %s276 = scalar_lea.sflag [#allocation4], %s275
        %s277 = sand.u32 %s119, 1
        %s278 = smul.addr %s277, 4
        %s279 = scalar_lea.vmem [#allocation7], %s278
        %p280 = pneg %p160
        %p281 = pneg %p157
        %s282 = sand.u32 %s27, 1
        %s283 = scalar_lea.sflag [#allocation9], %s282
        %s284 = sand.u32 %s147, 1
        %s285 = smul.addr %s284, 8
        %s286 = scalar_lea.vmem [#allocation8], %s285
        %p287 = pneg %p188
        %p288 = pneg %p185
        %s289 = sand.u32 %s27, 1
        %s290 = scalar_lea.sflag [#allocation9], %s289
        %s291 = sand.u32 %s175, 1
        %s292 = smul.addr %s291, 8
        %s293 = scalar_lea.vmem [#allocation10], %s292
        %v295 = vld [vmem:[%s253] sm:$0xff]
        %v296 = vpack.c.bf16 %v295, %v295
        %v297 = vld [vmem:[#allocation5] sm:$0xf]
        %v298 = vld [vmem:[#allocation5 + $0x4] sm:$0xf]
        %v299 = vld [vmem:[#allocation5 + $0x8] sm:$0xf]
        %v300 = vld [vmem:[#allocation5 + $0xc] sm:$0xf]
        %v301 = vld [vmem:[%s2] sm:$0x1]
        %v303 = vlaneseq
        %v304 = vshrl.u32 %v303, 7
        %v305 = vsub.s32 0, %v304
        %v306 = vrot.slane %v301, %v305
        %v312 = vunpack.c.l.b16 %v297
        %v313 = vunpack.c.l.b16 %v298
        %v314 = vunpack.c.l.b16 %v299
        %v315 = vunpack.c.l.b16 %v300
        %v316 = vpack.c.b16 %v313, %v312
        %v317 = vpack.c.b16 %v315, %v314
        %vm320 = vcmask 261120
        %v322 = vsel %vm320, %v296, 0
        %324 = vmatprep.subr.bf16.mxu0 0
        %325 = vmatpush1.bf16.msra.mxu0 0
        %326 = vmatprep.subr.bf16.mxu0 0
        %327 = vmatpush1.bf16.msra.mxu0 0
        %328 = vmatprep.subr.bf16.mxu0 0
        %329 = vmatpush1.bf16.msra.mxu0 0
        %330 = vmatprep.subr.bf16.mxu0 0
        %331 = vmatpush1.bf16.msra.mxu0 0
        %332 = vmatprep.subr.bf16.mxu0 0
        %333 = vmatpush1.bf16.msra.mxu0 0
        %334 = vmatprep.subr.bf16.mxu0 0
        %335 = vmatpush1.bf16.msra.mxu0 0
        %336 = vmatprep.subr.bf16.mxu0 0
        %337 = vmatpush1.bf16.msra.mxu0 %v317
        %338 = vmatprep.subr.bf16.mxu0 0
        %339 = vmatpush1.bf16.msra.mxu0 %v316
        %340 = vmatprep.subr.bf16.mxu0 0
        %341 = vmatpush2.bf16.msra.mxu0 0
        %342 = vmatprep.subr.bf16.mxu0 0
        %343 = vmatpush2.bf16.msra.mxu0 0
        %344 = vmatprep.subr.bf16.mxu0 0
        %345 = vmatpush2.bf16.msra.mxu0 0
        %346 = vmatprep.subr.bf16.mxu0 0
        %347 = vmatpush2.bf16.msra.mxu0 0
        %348 = vmatprep.subr.bf16.mxu0 0
        %349 = vmatpush2.bf16.msra.mxu0 0
        %350 = vmatprep.subr.bf16.mxu0 0
        %351 = vmatpush2.bf16.msra.mxu0 0
        %352 = vmatprep.subr.bf16.mxu0 0
        %353 = vmatpush2.bf16.msra.mxu0 0
        %354 = vmatprep.subr.bf16.mxu0 0
        %355 = vmatpush2.bf16.msra.mxu0 0
        %356 = vmatprep.mubr.bf16.mxu0 0
        %357 = vmatmul.mubr.bf16.gmra.mxu0 %v322
        %v358 = vpop.f32.mrf.mxu0
        %v359 = vadd.f32 %v306, %v358
        %v360 = vpop.f32.mrf.mxu0
        %v361 = vpop.f32.mrf.mxu0
        %v362 = vpop.f32.mrf.mxu0
        %363 = vdwg.mxu0
        %v364 = vpack.c.bf16 %v359, %v359
        %vm365 = vcmask 257024
        %366 = vst.msk [vmem:[%s279] sm:$0xf] %vm365, %v364
        %368 = vrot.lane.b32.xlu0 %v359, 96
        %v369 = vpop.permute.xlu0 %368
        %371 = vst.msk [vmem:[%s286] sm:$0xff] %vm320, %v369
        %372 = vrot.lane.b32.xlu0 %v359, 64
        %v373 = vpop.permute.xlu0 %372
        %375 = vst.msk [vmem:[%s293] sm:$0xff] %vm320, %v373
        %s376 = sand.u32 %s119, 1
        %s377 = scalar_lea.sflag [#allocation4], %s376
        %s378 = sand.u32 %s119, 1
        %s379 = smul.addr %s378, 4
        %s380 = scalar_lea.vmem [#allocation7], %s379
        %s381 = sand.u32 %s27, 1
        %s382 = scalar_lea.sflag [#allocation9], %s381
        %s383 = sand.u32 %s147, 1
        %s384 = smul.addr %s383, 8
        %s385 = scalar_lea.vmem [#allocation8], %s384
        %s386 = sand.u32 %s27, 1
        %s387 = scalar_lea.sflag [#allocation9], %s386
        %s388 = sand.u32 %s175, 1
        %s389 = smul.addr %s388, 8
        %s390 = scalar_lea.vmem [#allocation10], %s389
        // Predicated region
        $region41: #{tpu_custom_call.1} parent=31 // pred_check
          %p391 = pneg %p129
        $region42: #{tpu_custom_call.1} parent=31 // pred_check_branch
          %393 = sbr.rel (%p391) target = $region44
        $region43: #{tpu_custom_call.1} parent=31 // pred_region
          %s395 = ssub.s32 64, 64
          %396 = vsyncadd %s377, %s395
          %s397 = sadd.s32 %s32, %s31
          %s398 = smul.addr %s397, 64
          %s399 = scalar_lea.hbm %s3, %s398
          %s401 = sshll.u32 %s380, 4
          %s402 = int_to_ptr.vmem [resolvable:$true] %s401
          %404 = dma.vmem_to_hbm [thread:$0]  %s402, 64, %s399, %s377
        $region44: #{tpu_custom_call.1} parent=31 // pred_fallthru
          _
        // Predicated region
        $region45: #{tpu_custom_call.1} parent=31 // pred_check
          %p405 = pneg %p157
        $region46: #{tpu_custom_call.1} parent=31 // pred_check_branch
          %407 = sbr.rel (%p405) target = $region48
        $region47: #{tpu_custom_call.1} parent=31 // pred_region
          %s409 = ssub.s32 128, 128
          %410 = vsyncadd %s382, %s409
          %s411 = sadd.s32 %s32, %s31
          %s412 = smul.addr %s411, 128
          %s413 = scalar_lea.hbm %s4, %s412
          %s415 = sshll.u32 %s385, 4
          %s416 = int_to_ptr.vmem [resolvable:$true] %s415
          %418 = dma.vmem_to_hbm [thread:$0]  %s416, 128, %s413, %s382
        $region48: #{tpu_custom_call.1} parent=31 // pred_fallthru
          _
        // Predicated region
        $region49: #{tpu_custom_call.1} parent=31 // pred_check
          %p419 = pneg %p185
        $region50: #{tpu_custom_call.1} parent=31 // pred_check_branch
          %421 = sbr.rel (%p419) target = $region52
        $region51: #{tpu_custom_call.1} parent=31 // pred_region
          %s423 = ssub.s32 128, 128
          %424 = vsyncadd %s387, %s423
          %s425 = sadd.s32 %s32, %s31
          %s426 = smul.addr %s425, 128
          %s427 = scalar_lea.hbm %s5, %s426
          %s429 = sshll.u32 %s390, 4
          %s430 = int_to_ptr.vmem [resolvable:$true] %s429
          %432 = dma.vmem_to_hbm [thread:$0]  %s430, 128, %s427, %s387
        $region52: #{tpu_custom_call.1} parent=31 // pred_fallthru
          _
      $region32: #{tpu_custom_call.1} parent=5 // pred_fallthru
        _
      %p433 = scmp.le.s32.totalorder 2, %s22
      // Predicated region
      $region53: #{tpu_custom_call.1} parent=5 // pred_check
        %p434 = pneg %p433
      $region54: #{tpu_custom_call.1} parent=5 // pred_check_branch
        %436 = sbr.rel (%p434) target = $region56
      $region55: #{tpu_custom_call.1} parent=5 // pred_region
        %s437 = ssub.s32 %s22, 2
        // Predicated region
        $region57: #{tpu_custom_call.1} parent=55 // pred_check
          %p438 = pneg %p135
        $region58: #{tpu_custom_call.1} parent=55 // pred_check_branch
          %440 = sbr.rel (%p438) target = $region60
        $region59: #{tpu_custom_call.1} parent=55 // pred_region
          %s441 = sand.u32 %s120, 1
          %s442 = scalar_lea.sflag [#allocation4], %s441
          %s443 = sand.u32 %s120, 1
          %s444 = smul.addr %s443, 4
          %s445 = scalar_lea.vmem [#allocation7], %s444
          %446 = dma.done %s442, 64
        $region60: #{tpu_custom_call.1} parent=55 // pred_fallthru
          _
        // Predicated region
        $region61: #{tpu_custom_call.1} parent=55 // pred_check
          %p447 = pneg %p163
        $region62: #{tpu_custom_call.1} parent=55 // pred_check_branch
          %449 = sbr.rel (%p447) target = $region64
        $region63: #{tpu_custom_call.1} parent=55 // pred_region
          %s450 = sand.u32 %s28, 1
          %s451 = scalar_lea.sflag [#allocation9], %s450
          %s452 = sand.u32 %s148, 1
          %s453 = smul.addr %s452, 8
          %s454 = scalar_lea.vmem [#allocation8], %s453
          %455 = dma.done %s451, 128
        $region64: #{tpu_custom_call.1} parent=55 // pred_fallthru
          _
        // Predicated region
        $region65: #{tpu_custom_call.1} parent=55 // pred_check
          %p456 = pneg %p191
        $region66: #{tpu_custom_call.1} parent=55 // pred_check_branch
          %458 = sbr.rel (%p456) target = $region68
        $region67: #{tpu_custom_call.1} parent=55 // pred_region
          %s459 = sand.u32 %s28, 1
          %s460 = scalar_lea.sflag [#allocation9], %s459
          %s461 = sand.u32 %s176, 1
          %s462 = smul.addr %s461, 8
          %s463 = scalar_lea.vmem [#allocation10], %s462
          %464 = dma.done %s460, 128
        $region68: #{tpu_custom_call.1} parent=55 // pred_fallthru
          _
      $region56: #{tpu_custom_call.1} parent=5 // pred_fallthru
        _
    $region6: #{tpu_custom_call.1} parent=1 // loop_footer
      %s26 = sadd.s32 1, %s22
    $region7: #{tpu_custom_call.1} parent=1 // loop_footer_branch
      %21 = sbr.rel target = $region3
    $region8: #{tpu_custom_call.1} parent=1 // loop_exit
      _
    %465 = vsyncpa [#allocation3], 1
    %s466 = scalar_lea.sflag [#allocation3], 1
    %467 = vsyncpa %s466, 1
    %468 = vsyncpa [#allocation6], 1
    %469 = vsyncpa [#allocation4], 1
    %s470 = scalar_lea.sflag [#allocation4], 1
    %471 = vsyncpa %s470, 1
    %472 = vsyncpa [#allocation9], 1
    %s473 = scalar_lea.sflag [#allocation9], 1
    %474 = vsyncpa %s473, 1

</llo_original>
